<compile_context>
chip_gen: v7x
topology: tpu7x:2x2x1
jax: 0.10.0
libtpu: 0.0.40
codegen_flags: <defaults>
</compile_context>

<pallas_src>
import jax
import jax.numpy as jnp
from jax.experimental import pallas as pl
from jax.experimental.pallas import tpu as pltpu


# ----------------------------------------------------------------------------
# Kernel
# ----------------------------------------------------------------------------
def _linear_kernel(x_ref, w_ref, b_ref, o_ref):
    # x_ref : (tm, Kp)  bf16  VMEM
    # w_ref : (Kp, tn)  bf16  VMEM   (pre-transposed, pre-padded at init)
    # b_ref : (1,  tn)  f32   VMEM
    # o_ref : (tm, tn)        VMEM
    acc = jnp.dot(x_ref[...], w_ref[...], preferred_element_type=jnp.float32)
    o_ref[...] = (acc + b_ref[...]).astype(o_ref.dtype)


# ----------------------------------------------------------------------------
# Helpers
# ----------------------------------------------------------------------------
def _choose_tile(dim, candidates):
    """Largest candidate that evenly divides dim, else the full dim."""
    for c in candidates:
        if dim % c == 0:
            return c
    return dim


def _tile_bytes(tm, tn, kp, out_itemsize):
    """VMEM bytes for one set of pipeline buffers (double-buffered)."""
    per_buf = tm * kp * 2 + kp * tn * 2 + tn * 4 + tm * tn * out_itemsize
    return 2 * per_buf


def _vmem_capacity_bytes():
    """Per-core VMEM capacity; conservative fallback if query unavailable."""
    try:
        info = pltpu.get_tpu_info()
        cap = int(getattr(info, "vmem_capacity_bytes"))
        if cap > 0:
            return cap
    except Exception:
        pass
    return 64 * 1024 * 1024  # v7x per-TC value = safe lower bound


# ----------------------------------------------------------------------------
# One-time (init) weight preprocessing — NOT in the per-call hot path.
# ----------------------------------------------------------------------------
def prepare_linear_params(weight, bias):
    """weight: (d2, d1) f32, bias: (d2,) f32  ->  ((d1p, d2) bf16, (1, d2) f32)."""
    d2, d1 = weight.shape
    d1p = pl.cdiv(d1, 128) * 128                       # pad K to lane multiple
    w_pad = jnp.pad(weight, ((0, 0), (0, d1p - d1)))   # zero pad -> exact math
    w_t = jnp.asarray(w_pad.T, dtype=jnp.bfloat16)     # (d1p, d2) bf16, stored once
    b_row = bias.astype(jnp.float32).reshape(1, d2)
    return w_t, b_row


# ----------------------------------------------------------------------------
# Forward
# ----------------------------------------------------------------------------
def latent_reshape_forward(x, w_t, b_row):
    """Pallas implementation of LatentReshape.forward.

    x     : (N, T_plus_1, D)
    w_t   : (d1p, d2) bf16, from prepare_linear_params (d1p = round_up(d1, 128))
    b_row : (1, d2) f32
    returns (N, T_plus_1 - 1, d2 // (T_plus_1 - 1)) in x.dtype
    """
    N, T_plus_1, D = x.shape
    d1 = T_plus_1 * D
    d1p, d2 = w_t.shape
    assert d1p >= d1 and d1p % 128 == 0, "weight must be prepared with prepare_linear_params"
    T = T_plus_1 - 1
    assert d2 % T == 0, "d2 must be divisible by T for the final reshape"

    out_dtype = x.dtype
    out_itemsize = jnp.dtype(out_dtype).itemsize

    # Pad N up to a multiple of 16 (full bf16 sublane packing) and K to d1p.
    # x is tiny (N x d1); this pad+cast is one small fused XLA op.
    Np = max(16, pl.cdiv(N, 16) * 16)
    x_flat = x.reshape(N, d1).astype(jnp.bfloat16)
    x_flat = jnp.pad(x_flat, ((0, Np - N), (0, d1p - d1)))

    # --- generation-aware tile selection / VMEM budgeting ---------------------
    vmem_cap = _vmem_capacity_bytes()
    budget = vmem_cap // 2                      # headroom for Mosaic scratch

    tm = _choose_tile(Np, (256, 128, 64, 32, 16))
    tn_cands = [c for c in (512, 256, 128) if d2 % c == 0] or [d2]
    tn = tn_cands[-1]
    for cand in tn_cands:                       # prefer the widest tn that fits
        if _tile_bytes(tm, cand, d1p, out_itemsize) <= budget:
            tn = cand
            break
    while tm > 16 and _tile_bytes(tm, tn, d1p, out_itemsize) > budget:
        tm //= 2                                # last resort for very large d1
    need = _tile_bytes(tm, tn, d1p, out_itemsize)
    vmem_limit = int(min(vmem_cap, max(2 * need, 16 * 1024 * 1024)))

    # Grid: d2 tiles outer (megacore-shardable), N tiles inner (weight tile
    # stays resident across the batch sweep).  K (= d1p) is un-tiled: one pass,
    # no accumulator, no "arbitrary" axis.
    grid = (d2 // tn, Np // tm)

    cost = pl.CostEstimate(
        flops=2 * Np * d1p * d2,
        transcendentals=0,
        bytes_accessed=(Np * d1p * 2            # x  (bf16)
                        + d1p * d2 * 2          # W  (bf16, streamed once)
                        + d2 * 4                # bias (f32)
                        + Np * d2 * out_itemsize),
    )

    out = pl.pallas_call(
        _linear_kernel,
        out_shape=jax.ShapeDtypeStruct((Np, d2), out_dtype),
        grid=grid,
        in_specs=[
            pl.BlockSpec((tm, d1p), lambda j, i: (i, 0)),   # x rows
            pl.BlockSpec((d1p, tn), lambda j, i: (0, j)),   # weight column tile
            pl.BlockSpec((1, tn),   lambda j, i: (0, j)),   # bias tile
        ],
        out_specs=pl.BlockSpec((tm, tn), lambda j, i: (i, j)),
        compiler_params=pltpu.CompilerParams(
            dimension_semantics=("parallel", "parallel"),
            vmem_limit_bytes=vmem_limit,
        ),
        cost_estimate=cost,
    )(x_flat, w_t, b_row)

    # Drop padded rows; final view is metadata-only.
    return out[:N].reshape(N, T, d2 // T)


# ----------------------------------------------------------------------------
# Example / self-test
# ----------------------------------------------------------------------------
if __name__ == "__main__":
    # Shapes consistent with the forward:
    #   N=2, T+1=9, D=32  ->  d1 = 288 ; hidden-per-step = 32, T = 8 -> d2 = 256
    N, T_plus_1, D = 2, 9, 32
    d1 = T_plus_1 * D
    T = T_plus_1 - 1
    d2 = T * 32

    key = jax.random.PRNGKey(0)
    kx, kw, kb = jax.random.split(key, 3)

    x = jax.random.normal(kx, (N, T_plus_1, D), dtype=jnp.float32)
    bound = 1.0 / (d1 ** 0.5)  # nn.Linear-style init
    weight = jax.random.uniform(kw, (d2, d1), minval=-bound, maxval=bound,
                                dtype=jnp.float32)
    bias = jax.random.uniform(kb, (d2,), minval=-bound, maxval=bound,
                              dtype=jnp.float32)

    # One-time weight preprocessing (init-time; outside the hot path).
    w_t, b_row = prepare_linear_params(weight, bias)
    jax.block_until_ready((w_t, b_row))

    y = latent_reshape_forward(x, w_t, b_row)
    jax.block_until_ready(y)
    assert y.shape == (N, T, d2 // T)

    # Reference 1: matches the kernel's precision contract (bf16 operands,
    # f32 accumulate / bias add).
    xb = x.reshape(N, -1).astype(jnp.bfloat16).astype(jnp.float32)
    wb = weight.astype(jnp.bfloat16).astype(jnp.float32)
    ref_bf16 = (xb @ wb.T + bias).reshape(N, T, -1)
    assert jnp.allclose(y.astype(jnp.float32), ref_bf16, atol=1e-4, rtol=1e-4)

    # Reference 2: pure-f32 PyTorch semantics (loose tol for bf16 operands).
    ref_f32 = (x.reshape(N, -1) @ weight.T + bias).reshape(N, T, -1)
    assert jnp.allclose(y.astype(jnp.float32), ref_f32, atol=5e-2, rtol=5e-2)

    print("KERNEL_OK")
</pallas_src>

<mosaic_0001>
module attributes {stable_mosaic.version = 11 : i64} {
  func.func @_linear_kernel(%arg0: i32, %arg1: i32, %arg2: memref<16x384xbf16, #tpu.memory_space<vmem>>, %arg3: memref<384x256xbf16, #tpu.memory_space<vmem>>, %arg4: memref<1x256xf32, #tpu.memory_space<vmem>>, %arg5: memref<16x256xf32, #tpu.memory_space<vmem>>) attributes {dimension_semantics = [#tpu.dimension_semantics<parallel>, #tpu.dimension_semantics<parallel>], iteration_bounds = array<i64: 1, 1>, scalar_prefetch = 0 : i64, scratch_operands = 0 : i64, tpu.core_type = #tpu.core_type<tc>, window_params = [{transform_indices = @transform_0, window_bounds = array<i64: 16, 384>}, {transform_indices = @transform_1, window_bounds = array<i64: 384, 256>}, {transform_indices = @transform_2, window_bounds = array<i64: 1, 256>}, {transform_indices = @transform_3, window_bounds = array<i64: 16, 256>}]} {
    %c0 = arith.constant 0 : index
    %c0_0 = arith.constant 0 : index
    %0 = vector.load %arg2[%c0, %c0_0] : memref<16x384xbf16, #tpu.memory_space<vmem>>, vector<16x384xbf16>
    %c0_1 = arith.constant 0 : index
    %c0_2 = arith.constant 0 : index
    %1 = vector.load %arg3[%c0_1, %c0_2] : memref<384x256xbf16, #tpu.memory_space<vmem>>, vector<384x256xbf16>
    %cst = arith.constant dense<0.000000e+00> : vector<16x256xf32>
    %2 = tpu.matmul %0, %1, %cst {dimension_numbers = #tpu.dot_dimension_numbers<[1], [0], [0], [1], [0, 0, 1, 1], [], []>} : vector<16x384xbf16>, vector<384x256xbf16>, vector<16x256xf32> -> vector<16x256xf32>
    %c0_3 = arith.constant 0 : index
    %c0_4 = arith.constant 0 : index
    %3 = vector.load %arg4[%c0_3, %c0_4] : memref<1x256xf32, #tpu.memory_space<vmem>>, vector<1x256xf32>
    %4 = vector.broadcast %3 : vector<1x256xf32> to vector<16x256xf32>
    %5 = arith.addf %2, %4 : vector<16x256xf32>
    %c0_5 = arith.constant 0 : index
    %c0_6 = arith.constant 0 : index
    %6 = vector.load %arg5[%c0_5, %c0_6] : memref<16x256xf32, #tpu.memory_space<vmem>>, vector<16x256xf32>
    tpu.vector_store %arg5[%c0_5, %c0_6], %5 {strides = array<i32>} : memref<16x256xf32, #tpu.memory_space<vmem>>, vector<16x256xf32>,
    return
  }
  func.func @transform_0(%arg0: i32, %arg1: i32) -> (i32, i32) {
    %c0_i32 = arith.constant 0 : i32
    %c0_i32_0 = arith.constant 0 : i32
    return %arg1, %c0_i32 : i32, i32
  }
  func.func @transform_1(%arg0: i32, %arg1: i32) -> (i32, i32) {
    %c0_i32 = arith.constant 0 : i32
    %c0_i32_0 = arith.constant 0 : i32
    return %c0_i32, %arg0 : i32, i32
  }
  func.func @transform_2(%arg0: i32, %arg1: i32) -> (i32, i32) {
    %c0_i32 = arith.constant 0 : i32
    %c0_i32_0 = arith.constant 0 : i32
    return %c0_i32, %arg0 : i32, i32
  }
  func.func @transform_3(%arg0: i32, %arg1: i32) -> (i32, i32) {
    %c0_i32 = arith.constant 0 : i32
    return %arg1, %arg0 : i32, i32
  }
}

</mosaic_0001>

<llo_original>
// kernel: tpu_custom_call.1
$region0: #{tpu_custom_call.1}
  #allocation0 [shape = 'u32[]', space=smem, size = 0x4, offset = 0x4, fixed_abs, tag = 'smem constant byte address 0x4 - core index']
  #allocation1 [shape = 'u32[144,128]{1,0:T(1,128)}', space=vmem, size = 0x12000, scoped, tag = 'internal scratch']
  %s0 = inlined_call_operand.hbm [shape: bf16[16,384], index: 0, kind: input, shape index: {}]
  %s1 = inlined_call_operand.hbm [shape: bf16[384,256], index: 1, kind: input, shape index: {}]
  %s2 = inlined_call_operand.vmem [shape: f32[1,256], index: 2, kind: input, shape index: {}]
  %s3 = inlined_call_operand.hbm [shape: f32[16,256], index: 3, kind: output, shape index: {}]
  %s4 = sld [smem:[#allocation0]]
  $region30: #{tpu_custom_call.1} parent=0
    _
  %s6 = ssub.s32 1, %s4
  %s7 = scalar_select 0, %s6, %s4
  $region1: #{tpu_custom_call.1} parent=0
    #allocation2 [shape = 'u8[12288]{0}', space=vmem, size = 0x3000, scoped, tag = 'input window, operand 0, single buffered']
    #allocation3 [shape = 's32[1]{0}', space=sflag, size = 0x4, scoped, tag = 'scoped memory for tpu_custom_call.1']
    #allocation4 [shape = 's32[1]{0}', space=sflag, size = 0x4, scoped, tag = 'scoped memory for tpu_custom_call.1']
    #allocation5 [shape = 'u8[196608]{0}', space=vmem, size = 0x30000, scoped, tag = 'input window, operand 1, single buffered']
    #allocation6 [shape = 's32[1]{0}', space=sflag, size = 0x4, scoped, tag = 'scoped memory for tpu_custom_call.1']
    #allocation7 [shape = 'u8[16384]{0}', space=vmem, size = 0x4000, scoped, tag = 'output window, operand 0, single buffered']
    %8 = vsyncpa [#allocation3], 0
    %9 = vsyncpa [#allocation6], 0
    %10 = vsyncpa [#allocation4], 0
    // Predicated region
    $region2: #{tpu_custom_call.1} parent=1 // pred_check
      _
    $region3: #{tpu_custom_call.1} parent=1 // pred_check_branch
      %12 = sbr.rel (0) target = $region5
    $region4: #{tpu_custom_call.1} parent=1 // pred_region
      %s14 = ssub.s32 384, 384
      %15 = vsyncadd [#allocation3], %s14
      %s16 = sshll.u32 [#allocation2], 4
      %s17 = int_to_ptr.vmem [resolvable:$true] %s16
      %22 = dma.hbm_to_vmem [thread:$0]  %s0, 384, %s17, [#allocation3], 192, 192, 12
    $region5: #{tpu_custom_call.1} parent=1 // pred_fallthru
      _
    // Predicated region
    $region6: #{tpu_custom_call.1} parent=1 // pred_check
      _
    $region7: #{tpu_custom_call.1} parent=1 // pred_check_branch
      %24 = sbr.rel (0) target = $region9
    $region8: #{tpu_custom_call.1} parent=1 // pred_region
      %s26 = ssub.s32 6144, 6144
      %27 = vsyncadd [#allocation6], %s26
      %s28 = sshll.u32 [#allocation5], 4
      %s29 = int_to_ptr.vmem [resolvable:$true] %s28
      %34 = dma.hbm_to_vmem [thread:$0]  %s1, 6144, %s29, [#allocation6], 128, 128, 8
    $region9: #{tpu_custom_call.1} parent=1 // pred_fallthru
      _
    // Predicated region
    $region10: #{tpu_custom_call.1} parent=1 // pred_check
      _
    $region11: #{tpu_custom_call.1} parent=1 // pred_check_branch
      %36 = sbr.rel (0) target = $region13
    $region12: #{tpu_custom_call.1} parent=1 // pred_region
      _
    $region13: #{tpu_custom_call.1} parent=1 // pred_fallthru
      _
    // Predicated region
    $region14: #{tpu_custom_call.1} parent=1 // pred_check
      _
    $region15: #{tpu_custom_call.1} parent=1 // pred_check_branch
      %38 = sbr.rel (0) target = $region17
    $region16: #{tpu_custom_call.1} parent=1 // pred_region
      %39 = dma.done [#allocation3], 384
    $region17: #{tpu_custom_call.1} parent=1 // pred_fallthru
      _
    // Predicated region
    $region18: #{tpu_custom_call.1} parent=1 // pred_check
      _
    $region19: #{tpu_custom_call.1} parent=1 // pred_check_branch
      %41 = sbr.rel (0) target = $region21
    $region20: #{tpu_custom_call.1} parent=1 // pred_region
      %42 = dma.done [#allocation6], 6144
    $region21: #{tpu_custom_call.1} parent=1 // pred_fallthru
      _
    %v44 = vld [vmem:[#allocation2] sm:$0xff]
    %v45 = vld [vmem:[#allocation2 + $0x8] sm:$0xf]
    %v46 = vld [vmem:[#allocation2 + $0xc] sm:$0xff]
    %v47 = vld [vmem:[#allocation2 + $0x14] sm:$0xf]
    %v48 = vld [vmem:[#allocation5] sm:$0xff]
    %v49 = vld [vmem:[#allocation5 + $0x8] sm:$0xff]
    %v50 = vld [vmem:[#allocation5 + $0x10] sm:$0xff]
    %v51 = vld [vmem:[#allocation5 + $0x18] sm:$0xff]
    %v52 = vld [vmem:[#allocation5 + $0x20] sm:$0xff]
    %v53 = vld [vmem:[#allocation5 + $0x28] sm:$0xff]
    %v54 = vld [vmem:[#allocation5 + $0x30] sm:$0xff]
    %v55 = vld [vmem:[#allocation5 + $0x38] sm:$0xff]
    %v56 = vld [vmem:[#allocation5 + $0x40] sm:$0xff]
    %v57 = vld [vmem:[#allocation5 + $0x48] sm:$0xff]
    %v58 = vld [vmem:[#allocation5 + $0x50] sm:$0xff]
    %v59 = vld [vmem:[#allocation5 + $0x58] sm:$0xff]
    %v60 = vld [vmem:[#allocation5 + $0x60] sm:$0xff]
    %v61 = vld [vmem:[#allocation5 + $0x68] sm:$0xff]
    %v62 = vld [vmem:[#allocation5 + $0x70] sm:$0xff]
    %v63 = vld [vmem:[#allocation5 + $0x78] sm:$0xff]
    %v64 = vld [vmem:[#allocation5 + $0x80] sm:$0xff]
    %v65 = vld [vmem:[#allocation5 + $0x88] sm:$0xff]
    %v66 = vld [vmem:[#allocation5 + $0x90] sm:$0xff]
    %v67 = vld [vmem:[#allocation5 + $0x98] sm:$0xff]
    %v68 = vld [vmem:[#allocation5 + $0xa0] sm:$0xff]
    %v69 = vld [vmem:[#allocation5 + $0xa8] sm:$0xff]
    %v70 = vld [vmem:[#allocation5 + $0xb0] sm:$0xff]
    %v71 = vld [vmem:[#allocation5 + $0xb8] sm:$0xff]
    %v72 = vld [vmem:[#allocation5 + $0xc0] sm:$0xff]
    %v73 = vld [vmem:[#allocation5 + $0xc8] sm:$0xff]
    %v74 = vld [vmem:[#allocation5 + $0xd0] sm:$0xff]
    %v75 = vld [vmem:[#allocation5 + $0xd8] sm:$0xff]
    %v76 = vld [vmem:[#allocation5 + $0xe0] sm:$0xff]
    %v77 = vld [vmem:[#allocation5 + $0xe8] sm:$0xff]
    %v78 = vld [vmem:[#allocation5 + $0xf0] sm:$0xff]
    %v79 = vld [vmem:[#allocation5 + $0xf8] sm:$0xff]
    %v80 = vld [vmem:[#allocation5 + $0x100] sm:$0xff]
    %v81 = vld [vmem:[#allocation5 + $0x108] sm:$0xff]
    %v82 = vld [vmem:[#allocation5 + $0x110] sm:$0xff]
    %v83 = vld [vmem:[#allocation5 + $0x118] sm:$0xff]
    %v84 = vld [vmem:[#allocation5 + $0x120] sm:$0xff]
    %v85 = vld [vmem:[#allocation5 + $0x128] sm:$0xff]
    %v86 = vld [vmem:[#allocation5 + $0x130] sm:$0xff]
    %v87 = vld [vmem:[#allocation5 + $0x138] sm:$0xff]
    %v88 = vld [vmem:[#allocation5 + $0x140] sm:$0xff]
    %v89 = vld [vmem:[#allocation5 + $0x148] sm:$0xff]
    %v90 = vld [vmem:[#allocation5 + $0x150] sm:$0xff]
    %v91 = vld [vmem:[#allocation5 + $0x158] sm:$0xff]
    %v92 = vld [vmem:[#allocation5 + $0x160] sm:$0xff]
    %v93 = vld [vmem:[#allocation5 + $0x168] sm:$0xff]
    %v94 = vld [vmem:[#allocation5 + $0x170] sm:$0xff]
    %v95 = vld [vmem:[#allocation5 + $0x178] sm:$0xff]
    %v96 = vld [vmem:[%s2] sm:$0x3]
    %v98 = vlaneseq
    %v99 = vshrl.u32 %v98, 7
    %v100 = vsub.s32 0, %v99
    %v101 = vrot.slane %v96, %v100
    %v102 = vlaneseq
    %v103 = vshrl.u32 %v102, 7
    %v104 = vsub.s32 1, %v103
    %v105 = vrot.slane %v96, %v104
    %v112 = vunpack.c.l.b16 %v44
    %v113 = vunpack.c.h.b16 %v44
    %v114 = vunpack.c.l.b16 %v45
    %v115 = vunpack.c.l.b16 %v46
    %v116 = vunpack.c.h.b16 %v46
    %v117 = vunpack.c.l.b16 %v47
    %v118 = vpack.c.b16 %v115, %v112
    %v119 = vpack.c.b16 %v116, %v113
    %v120 = vpack.c.b16 %v117, %v114
    %v172 = vunpack.c.l.b16 %v48
    %v173 = vunpack.c.h.b16 %v48
    %v174 = vunpack.c.l.b16 %v49
    %v175 = vunpack.c.h.b16 %v49
    %v176 = vunpack.c.l.b16 %v50
    %v177 = vunpack.c.h.b16 %v50
    %v178 = vunpack.c.l.b16 %v51
    %v179 = vunpack.c.h.b16 %v51
    %v180 = vunpack.c.l.b16 %v52
    %v181 = vunpack.c.h.b16 %v52
    %v182 = vunpack.c.l.b16 %v53
    %v183 = vunpack.c.h.b16 %v53
    %v184 = vunpack.c.l.b16 %v54
    %v185 = vunpack.c.h.b16 %v54
    %v186 = vunpack.c.l.b16 %v55
    %v187 = vunpack.c.h.b16 %v55
    %v188 = vunpack.c.l.b16 %v56
    %v189 = vunpack.c.h.b16 %v56
    %v190 = vunpack.c.l.b16 %v57
    %v191 = vunpack.c.h.b16 %v57
    %v192 = vunpack.c.l.b16 %v58
    %v193 = vunpack.c.h.b16 %v58
    %v194 = vunpack.c.l.b16 %v59
    %v195 = vunpack.c.h.b16 %v59
    %v196 = vunpack.c.l.b16 %v60
    %v197 = vunpack.c.h.b16 %v60
    %v198 = vunpack.c.l.b16 %v61
    %v199 = vunpack.c.h.b16 %v61
    %v200 = vunpack.c.l.b16 %v62
    %v201 = vunpack.c.h.b16 %v62
    %v202 = vunpack.c.l.b16 %v63
    %v203 = vunpack.c.h.b16 %v63
    %v204 = vunpack.c.l.b16 %v64
    %v205 = vunpack.c.h.b16 %v64
    %v206 = vunpack.c.l.b16 %v65
    %v207 = vunpack.c.h.b16 %v65
    %v208 = vunpack.c.l.b16 %v66
    %v209 = vunpack.c.h.b16 %v66
    %v210 = vunpack.c.l.b16 %v67
    %v211 = vunpack.c.h.b16 %v67
    %v212 = vunpack.c.l.b16 %v68
    %v213 = vunpack.c.h.b16 %v68
    %v214 = vunpack.c.l.b16 %v69
    %v215 = vunpack.c.h.b16 %v69
    %v216 = vunpack.c.l.b16 %v70
    %v217 = vunpack.c.h.b16 %v70
    %v218 = vunpack.c.l.b16 %v71
    %v219 = vunpack.c.h.b16 %v71
    %v220 = vunpack.c.l.b16 %v72
    %v221 = vunpack.c.h.b16 %v72
    %v222 = vunpack.c.l.b16 %v73
    %v223 = vunpack.c.h.b16 %v73
    %v224 = vunpack.c.l.b16 %v74
    %v225 = vunpack.c.h.b16 %v74
    %v226 = vunpack.c.l.b16 %v75
    %v227 = vunpack.c.h.b16 %v75
    %v228 = vunpack.c.l.b16 %v76
    %v229 = vunpack.c.h.b16 %v76
    %v230 = vunpack.c.l.b16 %v77
    %v231 = vunpack.c.h.b16 %v77
    %v232 = vunpack.c.l.b16 %v78
    %v233 = vunpack.c.h.b16 %v78
    %v234 = vunpack.c.l.b16 %v79
    %v235 = vunpack.c.h.b16 %v79
    %v236 = vunpack.c.l.b16 %v80
    %v237 = vunpack.c.h.b16 %v80
    %v238 = vunpack.c.l.b16 %v81
    %v239 = vunpack.c.h.b16 %v81
    %v240 = vunpack.c.l.b16 %v82
    %v241 = vunpack.c.h.b16 %v82
    %v242 = vunpack.c.l.b16 %v83
    %v243 = vunpack.c.h.b16 %v83
    %v244 = vunpack.c.l.b16 %v84
    %v245 = vunpack.c.h.b16 %v84
    %v246 = vunpack.c.l.b16 %v85
    %v247 = vunpack.c.h.b16 %v85
    %v248 = vunpack.c.l.b16 %v86
    %v249 = vunpack.c.h.b16 %v86
    %v250 = vunpack.c.l.b16 %v87
    %v251 = vunpack.c.h.b16 %v87
    %v252 = vunpack.c.l.b16 %v88
    %v253 = vunpack.c.h.b16 %v88
    %v254 = vunpack.c.l.b16 %v89
    %v255 = vunpack.c.h.b16 %v89
    %v256 = vunpack.c.l.b16 %v90
    %v257 = vunpack.c.h.b16 %v90
    %v258 = vunpack.c.l.b16 %v91
    %v259 = vunpack.c.h.b16 %v91
    %v260 = vunpack.c.l.b16 %v92
    %v261 = vunpack.c.h.b16 %v92
    %v262 = vunpack.c.l.b16 %v93
    %v263 = vunpack.c.h.b16 %v93
    %v264 = vunpack.c.l.b16 %v94
    %v265 = vunpack.c.h.b16 %v94
    %v266 = vunpack.c.l.b16 %v95
    %v267 = vunpack.c.h.b16 %v95
    %v268 = vpack.c.b16 %v174, %v172
    %v269 = vpack.c.b16 %v175, %v173
    %v270 = vpack.c.b16 %v178, %v176
    %v271 = vpack.c.b16 %v179, %v177
    %v272 = vpack.c.b16 %v182, %v180
    %v273 = vpack.c.b16 %v183, %v181
    %v274 = vpack.c.b16 %v186, %v184
    %v275 = vpack.c.b16 %v187, %v185
    %v276 = vpack.c.b16 %v190, %v188
    %v277 = vpack.c.b16 %v191, %v189
    %v278 = vpack.c.b16 %v194, %v192
    %v279 = vpack.c.b16 %v195, %v193
    %v280 = vpack.c.b16 %v198, %v196
    %v281 = vpack.c.b16 %v199, %v197
    %v282 = vpack.c.b16 %v202, %v200
    %v283 = vpack.c.b16 %v203, %v201
    %v284 = vpack.c.b16 %v206, %v204
    %v285 = vpack.c.b16 %v207, %v205
    %v286 = vpack.c.b16 %v210, %v208
    %v287 = vpack.c.b16 %v211, %v209
    %v288 = vpack.c.b16 %v214, %v212
    %v289 = vpack.c.b16 %v215, %v213
    %v290 = vpack.c.b16 %v218, %v216
    %v291 = vpack.c.b16 %v219, %v217
    %v292 = vpack.c.b16 %v222, %v220
    %v293 = vpack.c.b16 %v223, %v221
    %v294 = vpack.c.b16 %v226, %v224
    %v295 = vpack.c.b16 %v227, %v225
    %v296 = vpack.c.b16 %v230, %v228
    %v297 = vpack.c.b16 %v231, %v229
    %v298 = vpack.c.b16 %v234, %v232
    %v299 = vpack.c.b16 %v235, %v233
    %v300 = vpack.c.b16 %v238, %v236
    %v301 = vpack.c.b16 %v239, %v237
    %v302 = vpack.c.b16 %v242, %v240
    %v303 = vpack.c.b16 %v243, %v241
    %v304 = vpack.c.b16 %v246, %v244
    %v305 = vpack.c.b16 %v247, %v245
    %v306 = vpack.c.b16 %v250, %v248
    %v307 = vpack.c.b16 %v251, %v249
    %v308 = vpack.c.b16 %v254, %v252
    %v309 = vpack.c.b16 %v255, %v253
    %v310 = vpack.c.b16 %v258, %v256
    %v311 = vpack.c.b16 %v259, %v257
    %v312 = vpack.c.b16 %v262, %v260
    %v313 = vpack.c.b16 %v263, %v261
    %v314 = vpack.c.b16 %v266, %v264
    %v315 = vpack.c.b16 %v267, %v265
    %364 = vmatprep.subr.bf16.mxu0 %v269
    %365 = vmatpush1.bf16.msra.mxu0 %v268
    %366 = vmatprep.subr.bf16.mxu0 %v271
    %367 = vmatpush1.bf16.msra.mxu0 %v270
    %368 = vmatprep.subr.bf16.mxu0 %v273
    %369 = vmatpush1.bf16.msra.mxu0 %v272
    %370 = vmatprep.subr.bf16.mxu0 %v275
    %371 = vmatpush1.bf16.msra.mxu0 %v274
    %372 = vmatprep.subr.bf16.mxu0 %v277
    %373 = vmatpush1.bf16.msra.mxu0 %v276
    %374 = vmatprep.subr.bf16.mxu0 %v279
    %375 = vmatpush1.bf16.msra.mxu0 %v278
    %376 = vmatprep.subr.bf16.mxu0 %v281
    %377 = vmatpush1.bf16.msra.mxu0 %v280
    %378 = vmatprep.subr.bf16.mxu0 %v283
    %379 = vmatpush1.bf16.msra.mxu0 %v282
    %380 = vmatprep.subr.bf16.mxu0 %v285
    %381 = vmatpush1.bf16.msra.mxu0 %v284
    %382 = vmatprep.subr.bf16.mxu0 %v287
    %383 = vmatpush1.bf16.msra.mxu0 %v286
    %384 = vmatprep.subr.bf16.mxu0 %v289
    %385 = vmatpush1.bf16.msra.mxu0 %v288
    %386 = vmatprep.subr.bf16.mxu0 %v291
    %387 = vmatpush1.bf16.msra.mxu0 %v290
    %388 = vmatprep.subr.bf16.mxu0 %v293
    %389 = vmatpush1.bf16.msra.mxu0 %v292
    %390 = vmatprep.subr.bf16.mxu0 %v295
    %391 = vmatpush1.bf16.msra.mxu0 %v294
    %392 = vmatprep.subr.bf16.mxu0 %v297
    %393 = vmatpush1.bf16.msra.mxu0 %v296
    %394 = vmatprep.subr.bf16.mxu0 %v299
    %395 = vmatpush1.bf16.msra.mxu0 %v298
    %396 = vmatprep.mubr.bf16.mxu0 %v119
    %397 = vmatmul.mubr.bf16.gmra.mrb[0].mxu0 %v118
    %v398 = vpop.f32.mrb[0].mxu0
    %v399 = vadd.f32 %v101, %v398
    %v400 = vpop.f32.mrb[0].mxu0
    %v401 = vadd.f32 %v105, %v400
    %v402 = vpop.f32.mrb[0].mxu0
    %v403 = vadd.f32 %v101, %v402
    %v404 = vpop.f32.mrb[0].mxu0
    %v405 = vadd.f32 %v105, %v404
    %406 = vdwg.mxu0
    %407 = vmatprep.subr.bf16.mxu0 %v301
    %408 = vmatpush1.bf16.msra.mxu0 %v300
    %409 = vmatprep.subr.bf16.mxu0 %v303
    %410 = vmatpush1.bf16.msra.mxu0 %v302
    %411 = vmatprep.subr.bf16.mxu0 %v305
    %412 = vmatpush1.bf16.msra.mxu0 %v304
    %413 = vmatprep.subr.bf16.mxu0 %v307
    %414 = vmatpush1.bf16.msra.mxu0 %v306
    %415 = vmatprep.subr.bf16.mxu0 %v309
    %416 = vmatpush1.bf16.msra.mxu0 %v308
    %417 = vmatprep.subr.bf16.mxu0 %v311
    %418 = vmatpush1.bf16.msra.mxu0 %v310
    %419 = vmatprep.subr.bf16.mxu0 %v313
    %420 = vmatpush1.bf16.msra.mxu0 %v312
    %421 = vmatprep.subr.bf16.mxu0 %v315
    %422 = vmatpush1.bf16.msra.mxu0 %v314
    %423 = vmatprep.subr.bf16.mxu0 0
    %424 = vmatpush1.bf16.msra.mxu0 0
    %425 = vmatprep.subr.bf16.mxu0 0
    %426 = vmatpush1.bf16.msra.mxu0 0
    %427 = vmatprep.subr.bf16.mxu0 0
    %428 = vmatpush1.bf16.msra.mxu0 0
    %429 = vmatprep.subr.bf16.mxu0 0
    %430 = vmatpush1.bf16.msra.mxu0 0
    %431 = vmatprep.subr.bf16.mxu0 0
    %432 = vmatpush1.bf16.msra.mxu0 0
    %433 = vmatprep.subr.bf16.mxu0 0
    %434 = vmatpush1.bf16.msra.mxu0 0
    %435 = vmatprep.subr.bf16.mxu0 0
    %436 = vmatpush1.bf16.msra.mxu0 0
    %437 = vmatprep.subr.bf16.mxu0 0
    %438 = vmatpush1.bf16.msra.mxu0 0
    %439 = vmatprep.mubr.bf16.mxu0 0
    %440 = vmatmul.mubr.bf16.gmra.mrb[0].mxu0 %v120
    %v441 = vpop.f32.mrb[0].mxu0
    %v442 = vadd.f32 %v399, %v441
    %v443 = vpop.f32.mrb[0].mxu0
    %v444 = vadd.f32 %v401, %v443
    %v445 = vpop.f32.mrb[0].mxu0
    %v446 = vadd.f32 %v403, %v445
    %v447 = vpop.f32.mrb[0].mxu0
    %v448 = vadd.f32 %v405, %v447
    %449 = vdwg.mxu0
    %450 = vst [vmem:[#allocation7] sm:$0xff] %v442
    %451 = vst [vmem:[#allocation7 + $0x8] sm:$0xff] %v444
    %452 = vst [vmem:[#allocation7 + $0x10] sm:$0xff] %v446
    %453 = vst [vmem:[#allocation7 + $0x18] sm:$0xff] %v448
    // Predicated region
    $region22: #{tpu_custom_call.1} parent=1 // pred_check
      _
    $region23: #{tpu_custom_call.1} parent=1 // pred_check_branch
      %455 = sbr.rel (0) target = $region25
    $region24: #{tpu_custom_call.1} parent=1 // pred_region
      %s457 = ssub.s32 512, 512
      %458 = vsyncadd [#allocation4], %s457
      %s459 = sshll.u32 [#allocation7], 4
      %s460 = int_to_ptr.vmem [resolvable:$true] %s459
      %465 = dma.vmem_to_hbm [thread:$0]  %s460, 512, %s3, [#allocation4], 256, 256, 16
    $region25: #{tpu_custom_call.1} parent=1 // pred_fallthru
      _
    // Predicated region
    $region26: #{tpu_custom_call.1} parent=1 // pred_check
      _
    $region27: #{tpu_custom_call.1} parent=1 // pred_check_branch
      %467 = sbr.rel (0) target = $region29
    $region28: #{tpu_custom_call.1} parent=1 // pred_region
      %468 = dma.done [#allocation4], 512
    $region29: #{tpu_custom_call.1} parent=1 // pred_fallthru
      _
    %469 = vsyncpa [#allocation3], 1
    %470 = vsyncpa [#allocation6], 1
    %471 = vsyncpa [#allocation4], 1

</llo_original>
